<compile_context>
chip_gen: v5e
topology: v5e:2x2
jax: 0.10.0
libtpu: 0.0.40
codegen_flags: <defaults>
</compile_context>

<pallas_src>
from random import Random

import jax
import jax.numpy as jnp
from jax.experimental import pallas as pl
from jax.experimental.pallas import tpu as pltpu


# ----------------------------------------------------------------------------
# Kernel
# ----------------------------------------------------------------------------
def _pmd_kernel(params_ref, img_ref, out_ref):
    # params (SMEM, f32[5]):
    #  0: contrast factor applied BEFORE the HSV path (1.0 if disabled / mode==1)
    #  1: contrast factor applied AFTER the HSV path  (1.0 if disabled / mode==0)
    #  2: brightness delta (0.0 if disabled)
    #  3: saturation factor (1.0 if disabled)
    #  4: hue delta in degrees, already 180 * uniform(-hue, hue) (0.0 if disabled)
    c_pre = params_ref[0]
    c_post = params_ref[1]
    b_delta = params_ref[2]
    s_factor = params_ref[3]
    h_delta = params_ref[4]

    r = img_ref[0]                      # (TH, W) f32
    g = img_ref[1]
    b = img_ref[2]

    # ---- contrast (mode==0 branch folded into c_pre) + brightness -----------
    r = jnp.clip(jnp.clip(r * c_pre, 0.0, 1.0) + b_delta, 0.0, 1.0)
    g = jnp.clip(jnp.clip(g * c_pre, 0.0, 1.0) + b_delta, 0.0, 1.0)
    b = jnp.clip(jnp.clip(b * c_pre, 0.0, 1.0) + b_delta, 0.0, 1.0)

    # ---- RGB -> HSV ----------------------------------------------------------
    v = jnp.maximum(jnp.maximum(r, g), b)
    min_rgb = jnp.minimum(jnp.minimum(r, g), b)

    # s = (v - min)/v, safe at v == 0 because numerator is exactly 0 there.
    inv_v = pl.reciprocal(jnp.where(v != 0.0, v, 1.0), approx=True)
    s = (v - min_rgb) * inv_v

    inv_d = pl.reciprocal(v - min_rgb + 1e-8, approx=True)
    sixty_inv_d = 60.0 * inv_d
    h0 = (g - b) * sixty_inv_d
    h1 = (b - r) * sixty_inv_d + 120.0
    h2 = (r - g) * sixty_inv_d + 240.0
    # argmax over channels with first-max (r, then g, then b) tie semantics
    is_r = jnp.logical_and(r >= g, r >= b)
    is_g = jnp.logical_and(jnp.logical_not(is_r), g >= b)
    h = jnp.where(is_r, h0, jnp.where(is_g, h1, h2))
    # h is in (-60, 300): a single conditional wrap == % 360
    h = jnp.where(h < 0.0, h + 360.0, h)

    # ---- saturation / hue (flags folded into scalars) ------------------------
    s = jnp.clip(s * s_factor, 0.0, 1.0)
    h = h + h_delta
    h = h - 360.0 * jnp.floor(h * (1.0 / 360.0))      # == h % 360, no division

    # ---- HSV -> RGB (branch-free) --------------------------------------------
    c = v * s
    h6 = h * (1.0 / 60.0)                             # in [0, 6)

    def channel(n):
        k = n + h6                                    # in [1, 11)
        k = jnp.where(k >= 6.0, k - 6.0, k)           # == (n + h/60) % 6
        return v - c * jnp.clip(jnp.minimum(k, 4.0 - k), 0.0, 1.0)

    r_ = channel(5.0)
    g_ = channel(3.0)
    b_ = channel(1.0)

    # ---- contrast (mode==1 branch folded into c_post) ------------------------
    out_ref[0] = jnp.clip(r_ * c_post, 0.0, 1.0)
    out_ref[1] = jnp.clip(g_ * c_post, 0.0, 1.0)
    out_ref[2] = jnp.clip(b_ * c_post, 0.0, 1.0)


# ----------------------------------------------------------------------------
# Host-side parameter sampling (reproduces the torch module's random draws)
# ----------------------------------------------------------------------------
def sample_params(brightness=0.125, contrast=0.5, saturation=0.5, hue=0.1,
                  seed=0):
    """Sample the module's random draws and fold flags/mode into effective
    scalars (identity == factor 1 / delta 0 for inputs in [0, 1])."""
    rng = Random(seed)
    mode = rng.randint(0, 1)
    c_flag = rng.randint(0, 1)
    c_factor = rng.uniform(1 - contrast, 1 + contrast) if c_flag else 1.0
    b_flag = rng.randint(0, 1)
    b_delta = rng.uniform(-brightness, brightness) if b_flag else 0.0
    s_flag = rng.randint(0, 1)
    s_factor = rng.uniform(1 - saturation, 1 + saturation) if s_flag else 1.0
    h_flag = rng.randint(0, 1)
    h_delta = 180.0 * rng.uniform(-hue, hue) if h_flag else 0.0
    c_pre = c_factor if mode == 0 else 1.0
    c_post = c_factor if mode == 1 else 1.0
    return jnp.asarray([c_pre, c_post, b_delta, s_factor, h_delta],
                       dtype=jnp.float32)


# ----------------------------------------------------------------------------
# Wrapper
# ----------------------------------------------------------------------------
def _round_up(x, m):
    return ((x + m - 1) // m) * m


def photometric_distortion(data, params, *, tile_h=None,
                           vmem_budget_bytes=32 << 20):
    """Pallas-backed equivalent of PhotoMetricDistortion.forward((image, label)).

    Assumes image values in [0, 1] (same as the torch module, which clips to
    that range)."""
    image, label = data
    C, H, W = image.shape
    assert C == 3, "image must be CHW with 3 channels"

    # Lane-dense: pad W to a multiple of 128.
    Wp = _round_up(W, 128)

    # Tile height: largest multiple of 8 whose double-buffered in+out working
    # set (4 copies of a (3, th, Wp) f32 block) fits the budget.  Conservative
    # for v7x's 64 MiB VMEM; plenty of headroom on v5e/v6e.
    if tile_h is None:
        max_th = vmem_budget_bytes // (4 * 3 * Wp * 4)
        tile_h = min(1024, max(8, (max_th // 8) * 8))
    tile_h = max(8, (tile_h // 8) * 8)
    tile_h = min(tile_h, _round_up(H, 8))
    Hp = _round_up(H, tile_h)

    img = image
    if (Hp, Wp) != (H, W):
        img = jnp.pad(image, ((0, 0), (0, Hp - H), (0, Wp - W)))

    out = pl.pallas_call(
        _pmd_kernel,
        out_shape=jax.ShapeDtypeStruct((3, Hp, Wp), image.dtype),
        grid_spec=pltpu.PrefetchScalarGridSpec(
            num_scalar_prefetch=0,
            grid=(Hp // tile_h,),
            in_specs=[
                pl.BlockSpec(memory_space=pltpu.MemorySpace.SMEM),    # params
                pl.BlockSpec((3, tile_h, Wp), lambda i: (0, i, 0)),   # image
            ],
            out_specs=pl.BlockSpec((3, tile_h, Wp), lambda i: (0, i, 0)),
        ),
        compiler_params=pltpu.CompilerParams(
            dimension_semantics=("parallel",),
            vmem_limit_bytes=48 << 20,
        ),
    )(params, img)

    if (Hp, Wp) != (H, W):
        out = out[:, :H, :W]
    # Label passes through untouched, exactly like the torch module.
    return (out, label)


# ----------------------------------------------------------------------------
# Pure-JAX reference (mirrors the torch module's gather-table HSV<->RGB)
# ----------------------------------------------------------------------------
def _reference(image, params):
    c_pre, c_post, b_delta, s_factor, h_delta = [float(x) for x in params]
    img = jnp.clip(jnp.clip(image * c_pre, 0.0, 1.0) + b_delta, 0.0, 1.0)
    r, g, b = img[0], img[1], img[2]
    v = jnp.maximum(jnp.maximum(r, g), b)
    mn = jnp.minimum(jnp.minimum(r, g), b)
    s = jnp.where(v != 0.0, (v - mn) / jnp.where(v != 0.0, v, 1.0), 0.0)
    d = v - mn + 1e-8
    h0 = 60.0 * (g - b) / d
    h1 = 60.0 * (b - r) / d + 120.0
    h2 = 60.0 * (r - g) / d + 240.0
    is_r = (r >= g) & (r >= b)
    is_g = (~is_r) & (g >= b)
    h = jnp.where(is_r, h0, jnp.where(is_g, h1, h2)) % 360.0
    s = jnp.clip(s * s_factor, 0.0, 1.0)
    h = (h + h_delta) % 360.0
    c = v * s
    x = c * (1.0 - jnp.abs((h / 60.0) % 2.0 - 1.0))
    m = v - c
    z = jnp.zeros_like(c)
    hid = jnp.clip(jnp.floor(h / 60.0).astype(jnp.int32), 0, 5)

    def pick(t):
        stack = jnp.stack(t, 0)
        return jnp.take_along_axis(stack, hid[None], axis=0)[0]

    r_ = pick([c, x, z, z, x, c]) + m
    g_ = pick([x, c, c, x, z, z]) + m
    b_ = pick([z, z, x, c, c, x]) + m
    return jnp.stack([jnp.clip(r_ * c_post, 0.0, 1.0),
                      jnp.clip(g_ * c_post, 0.0, 1.0),
                      jnp.clip(b_ * c_post, 0.0, 1.0)], 0)


# ----------------------------------------------------------------------------
# Demo
# ----------------------------------------------------------------------------
if __name__ == "__main__":
    key = jax.random.PRNGKey(0)
    k_img, _ = jax.random.split(key)
    # Deliberately awkward shape to exercise H/W padding + multi-block tiling.
    H, W = 60, 200
    image = jax.random.uniform(k_img, (3, H, W), dtype=jnp.float32)  # RGB in [0,1]
    label = jnp.zeros((H, W), dtype=jnp.int32)

    params = sample_params(seed=0)
    out_img, out_label = photometric_distortion((image, label), params,
                                                tile_h=16)
    jax.block_until_ready(out_img)

    assert out_img.shape == (3, H, W) and out_img.dtype == jnp.float32
    assert bool(jnp.all(jnp.isfinite(out_img)))
    # Tolerance accounts for approx (EUP) reciprocals inside the kernel.
    ref = _reference(image, params)
    assert bool(jnp.allclose(out_img, ref, atol=1e-2)), \
        float(jnp.max(jnp.abs(out_img - ref)))
    assert bool(jnp.all(out_label == label))
    print("KERNEL_OK")
</pallas_src>

<mosaic_0001>
module attributes {stable_mosaic.version = 11 : i64} {
  func.func @_pmd_kernel(%arg0: i32, %arg1: memref<5xf32, #tpu.memory_space<smem>>, %arg2: memref<3x16x256xf32, #tpu.memory_space<vmem>>, %arg3: memref<3x16x256xf32, #tpu.memory_space<vmem>>) attributes {dimension_semantics = [#tpu.dimension_semantics<parallel>], iteration_bounds = array<i64: 4>, scalar_prefetch = 0 : i64, scratch_operands = 0 : i64, tpu.core_type = #tpu.core_type<tc>, window_params = [{transform_indices = @transform_0, window_bounds = array<i64: 5>}, {transform_indices = @transform_1, window_bounds = array<i64: 3, 16, 256>}, {transform_indices = @transform_2, window_bounds = array<i64: 3, 16, 256>}]} {
    %c0 = arith.constant 0 : index
    %0 = memref.load %arg1[%c0] : memref<5xf32, #tpu.memory_space<smem>>
    %c1 = arith.constant 1 : index
    %1 = memref.load %arg1[%c1] : memref<5xf32, #tpu.memory_space<smem>>
    %c2 = arith.constant 2 : index
    %2 = memref.load %arg1[%c2] : memref<5xf32, #tpu.memory_space<smem>>
    %c3 = arith.constant 3 : index
    %3 = memref.load %arg1[%c3] : memref<5xf32, #tpu.memory_space<smem>>
    %c4 = arith.constant 4 : index
    %4 = memref.load %arg1[%c4] : memref<5xf32, #tpu.memory_space<smem>>
    %c0_0 = arith.constant 0 : index
    %c0_1 = arith.constant 0 : index
    %c0_2 = arith.constant 0 : index
    %5 = vector.load %arg2[%c0_0, %c0_1, %c0_2] : memref<3x16x256xf32, #tpu.memory_space<vmem>>, vector<1x16x256xf32>
    %6 = vector.shape_cast %5 : vector<1x16x256xf32> to vector<16x256xf32>
    %c1_3 = arith.constant 1 : index
    %c0_4 = arith.constant 0 : index
    %c0_5 = arith.constant 0 : index
    %7 = vector.load %arg2[%c1_3, %c0_4, %c0_5] : memref<3x16x256xf32, #tpu.memory_space<vmem>>, vector<1x16x256xf32>
    %8 = vector.shape_cast %7 : vector<1x16x256xf32> to vector<16x256xf32>
    %c2_6 = arith.constant 2 : index
    %c0_7 = arith.constant 0 : index
    %c0_8 = arith.constant 0 : index
    %9 = vector.load %arg2[%c2_6, %c0_7, %c0_8] : memref<3x16x256xf32, #tpu.memory_space<vmem>>, vector<1x16x256xf32>
    %10 = vector.shape_cast %9 : vector<1x16x256xf32> to vector<16x256xf32>
    %11 = vector.broadcast %0 : f32 to vector<16x256xf32>
    %12 = arith.mulf %6, %11 : vector<16x256xf32>
    %cst = arith.constant 0.000000e+00 : f32
    %cst_9 = arith.constant 1.000000e+00 : f32
    %13 = vector.broadcast %cst : f32 to vector<16x256xf32>
    %14 = arith.maximumf %13, %12 : vector<16x256xf32>
    %15 = vector.broadcast %cst_9 : f32 to vector<16x256xf32>
    %16 = arith.minimumf %15, %14 : vector<16x256xf32>
    %17 = vector.broadcast %2 : f32 to vector<16x256xf32>
    %18 = arith.addf %16, %17 : vector<16x256xf32>
    %cst_10 = arith.constant 0.000000e+00 : f32
    %cst_11 = arith.constant 1.000000e+00 : f32
    %19 = vector.broadcast %cst_10 : f32 to vector<16x256xf32>
    %20 = arith.maximumf %19, %18 : vector<16x256xf32>
    %21 = vector.broadcast %cst_11 : f32 to vector<16x256xf32>
    %22 = arith.minimumf %21, %20 : vector<16x256xf32>
    %23 = vector.broadcast %0 : f32 to vector<16x256xf32>
    %24 = arith.mulf %8, %23 : vector<16x256xf32>
    %cst_12 = arith.constant 0.000000e+00 : f32
    %cst_13 = arith.constant 1.000000e+00 : f32
    %25 = vector.broadcast %cst_12 : f32 to vector<16x256xf32>
    %26 = arith.maximumf %25, %24 : vector<16x256xf32>
    %27 = vector.broadcast %cst_13 : f32 to vector<16x256xf32>
    %28 = arith.minimumf %27, %26 : vector<16x256xf32>
    %29 = vector.broadcast %2 : f32 to vector<16x256xf32>
    %30 = arith.addf %28, %29 : vector<16x256xf32>
    %cst_14 = arith.constant 0.000000e+00 : f32
    %cst_15 = arith.constant 1.000000e+00 : f32
    %31 = vector.broadcast %cst_14 : f32 to vector<16x256xf32>
    %32 = arith.maximumf %31, %30 : vector<16x256xf32>
    %33 = vector.broadcast %cst_15 : f32 to vector<16x256xf32>
    %34 = arith.minimumf %33, %32 : vector<16x256xf32>
    %35 = vector.broadcast %0 : f32 to vector<16x256xf32>
    %36 = arith.mulf %10, %35 : vector<16x256xf32>
    %cst_16 = arith.constant 0.000000e+00 : f32
    %cst_17 = arith.constant 1.000000e+00 : f32
    %37 = vector.broadcast %cst_16 : f32 to vector<16x256xf32>
    %38 = arith.maximumf %37, %36 : vector<16x256xf32>
    %39 = vector.broadcast %cst_17 : f32 to vector<16x256xf32>
    %40 = arith.minimumf %39, %38 : vector<16x256xf32>
    %41 = vector.broadcast %2 : f32 to vector<16x256xf32>
    %42 = arith.addf %40, %41 : vector<16x256xf32>
    %cst_18 = arith.constant 0.000000e+00 : f32
    %cst_19 = arith.constant 1.000000e+00 : f32
    %43 = vector.broadcast %cst_18 : f32 to vector<16x256xf32>
    %44 = arith.maximumf %43, %42 : vector<16x256xf32>
    %45 = vector.broadcast %cst_19 : f32 to vector<16x256xf32>
    %46 = arith.minimumf %45, %44 : vector<16x256xf32>
    %47 = arith.maximumf %22, %34 : vector<16x256xf32>
    %48 = arith.maximumf %47, %46 : vector<16x256xf32>
    %49 = arith.minimumf %22, %34 : vector<16x256xf32>
    %50 = arith.minimumf %49, %46 : vector<16x256xf32>
    %cst_20 = arith.constant 0.000000e+00 : f32
    %51 = vector.broadcast %cst_20 : f32 to vector<16x256xf32>
    %52 = arith.cmpf one, %48, %51 : vector<16x256xf32>
    %cst_21 = arith.constant 1.000000e+00 : f32
    %53 = vector.broadcast %cst_21 : f32 to vector<16x256xf32>
    %54 = arith.select %52, %48, %53 : vector<16x256xi1>, vector<16x256xf32>
    %55 = tpu.reciprocal %54 {approx = true} : vector<16x256xf32> -> vector<16x256xf32>
    %56 = arith.subf %48, %50 : vector<16x256xf32>
    %57 = arith.mulf %56, %55 : vector<16x256xf32>
    %58 = arith.subf %48, %50 : vector<16x256xf32>
    %cst_22 = arith.constant 9.99999993E-9 : f32
    %59 = vector.broadcast %cst_22 : f32 to vector<16x256xf32>
    %60 = arith.addf %58, %59 : vector<16x256xf32>
    %61 = tpu.reciprocal %60 {approx = true} : vector<16x256xf32> -> vector<16x256xf32>
    %cst_23 = arith.constant 6.000000e+01 : f32
    %62 = vector.broadcast %cst_23 : f32 to vector<16x256xf32>
    %63 = arith.mulf %62, %61 : vector<16x256xf32>
    %64 = arith.subf %34, %46 : vector<16x256xf32>
    %65 = arith.mulf %64, %63 : vector<16x256xf32>
    %66 = arith.subf %46, %22 : vector<16x256xf32>
    %67 = arith.mulf %66, %63 : vector<16x256xf32>
    %cst_24 = arith.constant 1.200000e+02 : f32
    %68 = vector.broadcast %cst_24 : f32 to vector<16x256xf32>
    %69 = arith.addf %67, %68 : vector<16x256xf32>
    %70 = arith.subf %22, %34 : vector<16x256xf32>
    %71 = arith.mulf %70, %63 : vector<16x256xf32>
    %cst_25 = arith.constant 2.400000e+02 : f32
    %72 = vector.broadcast %cst_25 : f32 to vector<16x256xf32>
    %73 = arith.addf %71, %72 : vector<16x256xf32>
    %74 = arith.cmpf oge, %22, %34 : vector<16x256xf32>
    %75 = arith.cmpf oge, %22, %46 : vector<16x256xf32>
    %76 = arith.andi %74, %75 : vector<16x256xi1>
    %cst_26 = arith.constant dense<true> : vector<16x256xi1>
    %77 = arith.xori %76, %cst_26 : vector<16x256xi1>
    %78 = arith.cmpf oge, %34, %46 : vector<16x256xf32>
    %79 = arith.andi %77, %78 : vector<16x256xi1>
    %80 = arith.select %79, %69, %73 : vector<16x256xi1>, vector<16x256xf32>
    %81 = arith.select %76, %65, %80 : vector<16x256xi1>, vector<16x256xf32>
    %cst_27 = arith.constant 0.000000e+00 : f32
    %82 = vector.broadcast %cst_27 : f32 to vector<16x256xf32>
    %83 = arith.cmpf olt, %81, %82 : vector<16x256xf32>
    %cst_28 = arith.constant 3.600000e+02 : f32
    %84 = vector.broadcast %cst_28 : f32 to vector<16x256xf32>
    %85 = arith.addf %81, %84 : vector<16x256xf32>
    %86 = arith.select %83, %85, %81 : vector<16x256xi1>, vector<16x256xf32>
    %87 = vector.broadcast %3 : f32 to vector<16x256xf32>
    %88 = arith.mulf %57, %87 : vector<16x256xf32>
    %cst_29 = arith.constant 0.000000e+00 : f32
    %cst_30 = arith.constant 1.000000e+00 : f32
    %89 = vector.broadcast %cst_29 : f32 to vector<16x256xf32>
    %90 = arith.maximumf %89, %88 : vector<16x256xf32>
    %91 = vector.broadcast %cst_30 : f32 to vector<16x256xf32>
    %92 = arith.minimumf %91, %90 : vector<16x256xf32>
    %93 = vector.broadcast %4 : f32 to vector<16x256xf32>
    %94 = arith.addf %86, %93 : vector<16x256xf32>
    %cst_31 = arith.constant 0.00277777785 : f32
    %95 = vector.broadcast %cst_31 : f32 to vector<16x256xf32>
    %96 = arith.mulf %94, %95 : vector<16x256xf32>
    %97 = math.floor %96 : vector<16x256xf32>
    %cst_32 = arith.constant 3.600000e+02 : f32
    %98 = vector.broadcast %cst_32 : f32 to vector<16x256xf32>
    %99 = arith.mulf %98, %97 : vector<16x256xf32>
    %100 = arith.subf %94, %99 : vector<16x256xf32>
    %101 = arith.mulf %48, %92 : vector<16x256xf32>
    %cst_33 = arith.constant 0.0166666675 : f32
    %102 = vector.broadcast %cst_33 : f32 to vector<16x256xf32>
    %103 = arith.mulf %100, %102 : vector<16x256xf32>
    %cst_34 = arith.constant 5.000000e+00 : f32
    %104 = vector.broadcast %cst_34 : f32 to vector<16x256xf32>
    %105 = arith.addf %104, %103 : vector<16x256xf32>
    %cst_35 = arith.constant 6.000000e+00 : f32
    %106 = vector.broadcast %cst_35 : f32 to vector<16x256xf32>
    %107 = arith.cmpf oge, %105, %106 : vector<16x256xf32>
    %cst_36 = arith.constant 6.000000e+00 : f32
    %108 = vector.broadcast %cst_36 : f32 to vector<16x256xf32>
    %109 = arith.subf %105, %108 : vector<16x256xf32>
    %110 = arith.select %107, %109, %105 : vector<16x256xi1>, vector<16x256xf32>
    %cst_37 = arith.constant 4.000000e+00 : f32
    %111 = vector.broadcast %cst_37 : f32 to vector<16x256xf32>
    %112 = arith.subf %111, %110 : vector<16x256xf32>
    %113 = arith.minimumf %110, %112 : vector<16x256xf32>
    %cst_38 = arith.constant 0.000000e+00 : f32
    %cst_39 = arith.constant 1.000000e+00 : f32
    %114 = vector.broadcast %cst_38 : f32 to vector<16x256xf32>
    %115 = arith.maximumf %114, %113 : vector<16x256xf32>
    %116 = vector.broadcast %cst_39 : f32 to vector<16x256xf32>
    %117 = arith.minimumf %116, %115 : vector<16x256xf32>
    %118 = arith.mulf %101, %117 : vector<16x256xf32>
    %119 = arith.subf %48, %118 : vector<16x256xf32>
    %cst_40 = arith.constant 3.000000e+00 : f32
    %120 = vector.broadcast %cst_40 : f32 to vector<16x256xf32>
    %121 = arith.addf %120, %103 : vector<16x256xf32>
    %cst_41 = arith.constant 6.000000e+00 : f32
    %122 = vector.broadcast %cst_41 : f32 to vector<16x256xf32>
    %123 = arith.cmpf oge, %121, %122 : vector<16x256xf32>
    %cst_42 = arith.constant 6.000000e+00 : f32
    %124 = vector.broadcast %cst_42 : f32 to vector<16x256xf32>
    %125 = arith.subf %121, %124 : vector<16x256xf32>
    %126 = arith.select %123, %125, %121 : vector<16x256xi1>, vector<16x256xf32>
    %cst_43 = arith.constant 4.000000e+00 : f32
    %127 = vector.broadcast %cst_43 : f32 to vector<16x256xf32>
    %128 = arith.subf %127, %126 : vector<16x256xf32>
    %129 = arith.minimumf %126, %128 : vector<16x256xf32>
    %cst_44 = arith.constant 0.000000e+00 : f32
    %cst_45 = arith.constant 1.000000e+00 : f32
    %130 = vector.broadcast %cst_44 : f32 to vector<16x256xf32>
    %131 = arith.maximumf %130, %129 : vector<16x256xf32>
    %132 = vector.broadcast %cst_45 : f32 to vector<16x256xf32>
    %133 = arith.minimumf %132, %131 : vector<16x256xf32>
    %134 = arith.mulf %101, %133 : vector<16x256xf32>
    %135 = arith.subf %48, %134 : vector<16x256xf32>
    %cst_46 = arith.constant 1.000000e+00 : f32
    %136 = vector.broadcast %cst_46 : f32 to vector<16x256xf32>
    %137 = arith.addf %136, %103 : vector<16x256xf32>
    %cst_47 = arith.constant 6.000000e+00 : f32
    %138 = vector.broadcast %cst_47 : f32 to vector<16x256xf32>
    %139 = arith.cmpf oge, %137, %138 : vector<16x256xf32>
    %cst_48 = arith.constant 6.000000e+00 : f32
    %140 = vector.broadcast %cst_48 : f32 to vector<16x256xf32>
    %141 = arith.subf %137, %140 : vector<16x256xf32>
    %142 = arith.select %139, %141, %137 : vector<16x256xi1>, vector<16x256xf32>
    %cst_49 = arith.constant 4.000000e+00 : f32
    %143 = vector.broadcast %cst_49 : f32 to vector<16x256xf32>
    %144 = arith.subf %143, %142 : vector<16x256xf32>
    %145 = arith.minimumf %142, %144 : vector<16x256xf32>
    %cst_50 = arith.constant 0.000000e+00 : f32
    %cst_51 = arith.constant 1.000000e+00 : f32
    %146 = vector.broadcast %cst_50 : f32 to vector<16x256xf32>
    %147 = arith.maximumf %146, %145 : vector<16x256xf32>
    %148 = vector.broadcast %cst_51 : f32 to vector<16x256xf32>
    %149 = arith.minimumf %148, %147 : vector<16x256xf32>
    %150 = arith.mulf %101, %149 : vector<16x256xf32>
    %151 = arith.subf %48, %150 : vector<16x256xf32>
    %152 = vector.broadcast %1 : f32 to vector<16x256xf32>
    %153 = arith.mulf %119, %152 : vector<16x256xf32>
    %cst_52 = arith.constant 0.000000e+00 : f32
    %cst_53 = arith.constant 1.000000e+00 : f32
    %154 = vector.broadcast %cst_52 : f32 to vector<16x256xf32>
    %155 = arith.maximumf %154, %153 : vector<16x256xf32>
    %156 = vector.broadcast %cst_53 : f32 to vector<16x256xf32>
    %157 = arith.minimumf %156, %155 : vector<16x256xf32>
    %c0_54 = arith.constant 0 : index
    %c0_55 = arith.constant 0 : index
    %c0_56 = arith.constant 0 : index
    %158 = vector.load %arg3[%c0_54, %c0_55, %c0_56] : memref<3x16x256xf32, #tpu.memory_space<vmem>>, vector<1x16x256xf32>
    %159 = vector.shape_cast %158 : vector<1x16x256xf32> to vector<16x256xf32>
    %160 = vector.shape_cast %157 : vector<16x256xf32> to vector<1x16x256xf32>
    tpu.vector_store %arg3[%c0_54, %c0_55, %c0_56], %160 {strides = array<i32>} : memref<3x16x256xf32, #tpu.memory_space<vmem>>, vector<1x16x256xf32>,
    %161 = vector.broadcast %1 : f32 to vector<16x256xf32>
    %162 = arith.mulf %135, %161 : vector<16x256xf32>
    %cst_57 = arith.constant 0.000000e+00 : f32
    %cst_58 = arith.constant 1.000000e+00 : f32
    %163 = vector.broadcast %cst_57 : f32 to vector<16x256xf32>
    %164 = arith.maximumf %163, %162 : vector<16x256xf32>
    %165 = vector.broadcast %cst_58 : f32 to vector<16x256xf32>
    %166 = arith.minimumf %165, %164 : vector<16x256xf32>
    %c1_59 = arith.constant 1 : index
    %c0_60 = arith.constant 0 : index
    %c0_61 = arith.constant 0 : index
    %167 = vector.load %arg3[%c1_59, %c0_60, %c0_61] : memref<3x16x256xf32, #tpu.memory_space<vmem>>, vector<1x16x256xf32>
    %168 = vector.shape_cast %167 : vector<1x16x256xf32> to vector<16x256xf32>
    %169 = vector.shape_cast %166 : vector<16x256xf32> to vector<1x16x256xf32>
    tpu.vector_store %arg3[%c1_59, %c0_60, %c0_61], %169 {strides = array<i32>} : memref<3x16x256xf32, #tpu.memory_space<vmem>>, vector<1x16x256xf32>,
    %170 = vector.broadcast %1 : f32 to vector<16x256xf32>
    %171 = arith.mulf %151, %170 : vector<16x256xf32>
    %cst_62 = arith.constant 0.000000e+00 : f32
    %cst_63 = arith.constant 1.000000e+00 : f32
    %172 = vector.broadcast %cst_62 : f32 to vector<16x256xf32>
    %173 = arith.maximumf %172, %171 : vector<16x256xf32>
    %174 = vector.broadcast %cst_63 : f32 to vector<16x256xf32>
    %175 = arith.minimumf %174, %173 : vector<16x256xf32>
    %c2_64 = arith.constant 2 : index
    %c0_65 = arith.constant 0 : index
    %c0_66 = arith.constant 0 : index
    %176 = vector.load %arg3[%c2_64, %c0_65, %c0_66] : memref<3x16x256xf32, #tpu.memory_space<vmem>>, vector<1x16x256xf32>
    %177 = vector.shape_cast %176 : vector<1x16x256xf32> to vector<16x256xf32>
    %178 = vector.shape_cast %175 : vector<16x256xf32> to vector<1x16x256xf32>
    tpu.vector_store %arg3[%c2_64, %c0_65, %c0_66], %178 {strides = array<i32>} : memref<3x16x256xf32, #tpu.memory_space<vmem>>, vector<1x16x256xf32>,
    return
  }
  func.func @transform_0(%arg0: i32) -> i32 {
    %c0_i32 = arith.constant 0 : i32
    %c0_i32_0 = arith.constant 0 : i32
    return %c0_i32 : i32
  }
  func.func @transform_1(%arg0: i32) -> (i32, i32, i32) {
    %c0_i32 = arith.constant 0 : i32
    %c0_i32_0 = arith.constant 0 : i32
    %c0_i32_1 = arith.constant 0 : i32
    return %c0_i32, %arg0, %c0_i32_0 : i32, i32, i32
  }
  func.func @transform_2(%arg0: i32) -> (i32, i32, i32) {
    %c0_i32 = arith.constant 0 : i32
    %c0_i32_0 = arith.constant 0 : i32
    %c0_i32_1 = arith.constant 0 : i32
    return %c0_i32, %arg0, %c0_i32_0 : i32, i32, i32
  }
}

</mosaic_0001>

<llo_original>
// kernel: tpu_custom_call.1
$region0: #{tpu_custom_call.1}
  #allocation0 [shape = 'u32[]', space=smem, size = 0x4, offset = 0x4, fixed_abs, tag = 'smem constant byte address 0x4 - core index']
  #allocation1 [shape = 'u32[72,128]{1,0:T(1,128)}', space=vmem, size = 0x9000, scoped, tag = 'internal scratch']
  #allocation8 [shape = 's32[]', space=sflag, size = 0x4, offset = 0, fixed_abs, tag = 'sflag constant byte address 0x0 - dummy sync flag']
  #allocation10 [shape = 's32[]', space=sflag, size = 0x4, offset = 0, fixed_abs, tag = 'sflag constant byte address 0x0 - dummy sync flag']
  %s0 = inlined_call_operand.hbm [shape: f32[5], index: 0, kind: input, shape index: {}]
  %s1 = inlined_call_operand.hbm [shape: f32[3,64,256], index: 1, kind: input, shape index: {}]
  %s2 = inlined_call_operand.hbm [shape: f32[3,64,256], index: 2, kind: output, shape index: {}]
  %s3 = sld [smem:[#allocation0]]
  $region49: #{tpu_custom_call.1} parent=0
    _
  %s5 = ssub.s32 1, %s3
  %s6 = scalar_select 0, %s5, %s3
  $region1: #{tpu_custom_call.1} parent=0
    #allocation2 [shape = 'u8[512]{0}', space=smem, size = 0x200, scoped, tag = 'input window, operand 0, single buffered']
    #allocation3 [shape = 's32[2]{0}', space=sflag, size = 0x8, scoped, tag = 'scoped memory for tpu_custom_call.1']
    #allocation4 [shape = 's32[2]{0}', space=sflag, size = 0x8, scoped, tag = 'scoped memory for tpu_custom_call.1']
    #allocation5 [shape = 's32[2]{0}', space=sflag, size = 0x8, scoped, tag = 'scoped memory for tpu_custom_call.1']
    #allocation6 [shape = 'u8[98304]{0}', space=vmem, size = 0x18000, scoped, tag = 'input window, operand 1']
    #allocation7 [shape = 'u8[98304]{0}', space=vmem, size = 0x18000, scoped, tag = 'output window, operand 0']
    %7 = vsyncpa [#allocation5], 0
    %8 = vsyncpa [#allocation3], 0
    %s9 = scalar_lea.sflag [#allocation3], 1
    %10 = vsyncpa %s9, 0
    %11 = vsyncpa [#allocation4], 0
    %s12 = scalar_lea.sflag [#allocation4], 1
    %13 = vsyncpa %s12, 0
    loop: start=0, step=1, limit=6
    $region2: #{tpu_custom_call.1} parent=1 // loop_pre_header
      _
    $region3: #{tpu_custom_call.1} parent=1 // loop_header
      %s15 = sphi 0, %s19
      %p16 = scmp.ge.s32.totalorder %s15, 6
      %s23 = sphi 0, %s23
      %s25 = sphi 0, %s23
      %s26 = sphi 0, %s25
      %s40 = sphi 0, %s26
      %s46 = sphi 0, %s48
      %s49 = sphi 0, %s46
      %s50 = sphi 0, %s49
      %s66 = sphi 0, %s50
      %s72 = sphi 0, %s74
      %s75 = sphi 0, %s72
      %s76 = sphi 0, %s75
      %s92 = sphi 0, %s76
    $region4: #{tpu_custom_call.1} parent=1 // loop_header_branch
      %18 = sbr.rel (%p16) target = $region8
    $region5: #{tpu_custom_call.1} parent=1 // loop_body
      %s20 = ssub.s32 %s15, 1
      %s21 = ssub.s32 %s15, 2
      %s22 = sadd.s32 %s15, 1
      %s24 = sadd.s32 %s23, 1
      %p27 = scmp.eq.s32.totalorder %s15, 3
      %p28 = scmp.ne.s32.totalorder %s23, %s25
      %p29 = scmp.eq.s32.totalorder %s15, 0
      %p30 = por %p28, %p29
      %p31 = scmp.ne.s32.totalorder %s23, %s25
      %p32 = scmp.eq.s32.totalorder %s20, 3
      %p33 = por %p31, %p32
      %p34 = scmp.ne.s32.totalorder %s25, %s26
      %p35 = scmp.eq.s32.totalorder %s20, 0
      %p36 = por %p34, %p35
      %p37 = scmp.ne.s32.totalorder %s25, %s26
      %p38 = scmp.eq.s32.totalorder %s21, 3
      %p39 = por %p37, %p38
      %p41 = scmp.ne.s32.totalorder %s26, %s40
      %p42 = scmp.eq.s32.totalorder %s21, 0
      %p43 = por %p41, %p42
      %s44 = ssub.s32 %s15, %s22
      %p45 = scmp.eq.s32.totalorder %s44, 0
      %s47 = sadd.s32 %s46, 1
      %s48 = scalar_select %p45, %s46, %s47
      %p51 = pneg %p45
      %p52 = scmp.eq.s32.totalorder %s15, 3
      %p53 = por %p51, %p52
      %p54 = scmp.ne.s32.totalorder %s46, %s49
      %p55 = scmp.eq.s32.totalorder %s15, 0
      %p56 = por %p54, %p55
      %p57 = scmp.ne.s32.totalorder %s46, %s49
      %p58 = scmp.eq.s32.totalorder %s20, 3
      %p59 = por %p57, %p58
      %p60 = scmp.ne.s32.totalorder %s49, %s50
      %p61 = scmp.eq.s32.totalorder %s20, 0
      %p62 = por %p60, %p61
      %p63 = scmp.ne.s32.totalorder %s49, %s50
      %p64 = scmp.eq.s32.totalorder %s21, 3
      %p65 = por %p63, %p64
      %p67 = scmp.ne.s32.totalorder %s50, %s66
      %p68 = scmp.eq.s32.totalorder %s21, 0
      %p69 = por %p67, %p68
      %s70 = ssub.s32 %s15, %s22
      %p71 = scmp.eq.s32.totalorder %s70, 0
      %s73 = sadd.s32 %s72, 1
      %s74 = scalar_select %p71, %s72, %s73
      %p77 = pneg %p71
      %p78 = scmp.eq.s32.totalorder %s15, 3
      %p79 = por %p77, %p78
      %p80 = scmp.ne.s32.totalorder %s72, %s75
      %p81 = scmp.eq.s32.totalorder %s15, 0
      %p82 = por %p80, %p81
      %p83 = scmp.ne.s32.totalorder %s72, %s75
      %p84 = scmp.eq.s32.totalorder %s20, 3
      %p85 = por %p83, %p84
      %p86 = scmp.ne.s32.totalorder %s75, %s76
      %p87 = scmp.eq.s32.totalorder %s20, 0
      %p88 = por %p86, %p87
      %p89 = scmp.ne.s32.totalorder %s75, %s76
      %p90 = scmp.eq.s32.totalorder %s21, 3
      %p91 = por %p89, %p90
      %p93 = scmp.ne.s32.totalorder %s76, %s92
      %p94 = scmp.eq.s32.totalorder %s21, 0
      %p95 = por %p93, %p94
      %p96 = scmp.le.s32.totalorder 1, %s15
      %p97 = scmp.lt.s32.totalorder %s15, 5
      %p98 = pnand %p96, %p97
      %p99 = pneg %p98
      // Predicated region
      $region9: #{tpu_custom_call.1} parent=5 // pred_check
        _
      $region10: #{tpu_custom_call.1} parent=5 // pred_check_branch
        %101 = sbr.rel (%p98) target = $region12
      $region11: #{tpu_custom_call.1} parent=5 // pred_region
        %s102 = ssub.s32 %s15, 1
        // Predicated region
        $region13: #{tpu_custom_call.1} parent=11 // pred_check
          %p103 = pneg %p36
        $region14: #{tpu_custom_call.1} parent=11 // pred_check_branch
          %105 = sbr.rel (%p103) target = $region16
        $region15: #{tpu_custom_call.1} parent=11 // pred_region
          %107 = vsyncadd [#allocation5], 0
          %s109 = sshll.u32 %s0, 4
          %s110 = int_to_ptr.hbm [resolvable:$true] %s109
          %112 = dma.hbm_to_smem %s110, 16, [#allocation2], [#allocation5]
        $region16: #{tpu_custom_call.1} parent=11 // pred_fallthru
          _
      $region12: #{tpu_custom_call.1} parent=5 // pred_fallthru
        _
      %p113 = scmp.lt.s32.totalorder %s15, 4
      // Predicated region
      $region17: #{tpu_custom_call.1} parent=5 // pred_check
        %p114 = pneg %p113
      $region18: #{tpu_custom_call.1} parent=5 // pred_check_branch
        %116 = sbr.rel (%p114) target = $region20
      $region19: #{tpu_custom_call.1} parent=5 // pred_region
        // Predicated region
        $region21: #{tpu_custom_call.1} parent=19 // pred_check
          %p117 = pneg %p56
        $region22: #{tpu_custom_call.1} parent=19 // pred_check_branch
          %119 = sbr.rel (%p117) target = $region24
        $region23: #{tpu_custom_call.1} parent=19 // pred_region
          #allocation9 [shape = 'u32[6]{0}', space=smem, size = 0x18, scoped, tag = 'DMA stride descriptor']
          %s120 = sand.u32 %s46, 1
          %s121 = scalar_lea.sflag [#allocation3], %s120
          %s122 = sand.u32 %s46, 1
          %s123 = smul.addr %s122, 96
          %s124 = scalar_lea.vmem [#allocation6], %s123
          %s125 = smul.u32 2, %s15
          %127 = vsyncadd %s121, 0
          %s128 = smul.addr %s125, 2
          %s129 = smul.addr %s128, 8
          %s130 = scalar_lea.hbm %s1, %s129
          %s132 = sshll.u32 1, 14
          %s133 = sxor.u32 4294967295, %s132
          %s135 = sld [smem:[#allocation0]]
          %s136 = sadd.s32 2, %s135
          %s138 = sshll.u32 7, 26
          %s139 = sxor.u32 4294967295, %s138
          %s140 = sand.u32 0, %s139
          %s141 = sshll.u32 %s136, 26
          %s142 = sor.u32 %s140, %s141
          %s143 = sshll.u32 %s130, 4
          %s144 = int_to_ptr.hbm [resolvable:$true] %s143
          %s145 = sshll.u32 %s124, 4
          %s146 = int_to_ptr.vmem [resolvable:$true] %s145
          %152 = sst [smem:[#allocation9]] 2048
          %s153 = scalar_lea.smem [#allocation9], 1
          %154 = sst [smem:[%s153]] 512
          %s155 = scalar_lea.smem [#allocation9], 2
          %156 = sst [smem:[%s155]] 2
          %s157 = scalar_lea.smem [#allocation9], 3
          %158 = sst [smem:[%s157]] 256
          %s159 = scalar_lea.smem [#allocation9], 4
          %160 = sst [smem:[%s159]] 256
          %s161 = scalar_lea.smem [#allocation9], 5
          %162 = sst [smem:[%s161]] 16
          %164 = dma.general %s144, 1536, %s146, %s121, [#allocation8], [#allocation9], %s142, 0
        $region24: #{tpu_custom_call.1} parent=19 // pred_fallthru
          _
      $region20: #{tpu_custom_call.1} parent=5 // pred_fallthru
        _
      %p165 = scmp.le.s32.totalorder 1, %s15
      %p166 = scmp.lt.s32.totalorder %s15, 5
      %p167 = pnand %p165, %p166
      %p168 = pneg %p167
      // Predicated region
      $region25: #{tpu_custom_call.1} parent=5 // pred_check
        _
      $region26: #{tpu_custom_call.1} parent=5 // pred_check_branch
        %170 = sbr.rel (%p167) target = $region28
      $region27: #{tpu_custom_call.1} parent=5 // pred_region
        %s171 = ssub.s32 %s15, 1
        // Predicated region
        $region29: #{tpu_custom_call.1} parent=27 // pred_check
          %p172 = pneg %p36
        $region30: #{tpu_custom_call.1} parent=27 // pred_check_branch
          %174 = sbr.rel (%p172) target = $region32
        $region31: #{tpu_custom_call.1} parent=27 // pred_region
          %176 = dma.done [#allocation5], 16
        $region32: #{tpu_custom_call.1} parent=27 // pred_fallthru
          _
        %s177 = sand.u32 %s49, 1
        %s178 = scalar_lea.sflag [#allocation3], %s177
        %s179 = sand.u32 %s49, 1
        %s180 = smul.addr %s179, 96
        %s181 = scalar_lea.vmem [#allocation6], %s180
        // Predicated region
        $region33: #{tpu_custom_call.1} parent=27 // pred_check
          %p182 = pneg %p62
        $region34: #{tpu_custom_call.1} parent=27 // pred_check_branch
          %184 = sbr.rel (%p182) target = $region36
        $region35: #{tpu_custom_call.1} parent=27 // pred_region
          %186 = dma.done %s178, 1536
        $region36: #{tpu_custom_call.1} parent=27 // pred_fallthru
          _
        %187 = sfence
        %p188 = pneg %p36
        %p189 = pneg %p33
        %s190 = sand.u32 %s49, 1
        %s191 = scalar_lea.sflag [#allocation3], %s190
        %s192 = sand.u32 %s49, 1
        %s193 = smul.addr %s192, 96
        %s194 = scalar_lea.vmem [#allocation6], %s193
        %p195 = pneg %p62
        %p196 = pneg %p59
        %p197 = pneg %p88
        %p198 = pneg %p85
        %s199 = sand.u32 %s75, 1
        %s200 = scalar_lea.sflag [#allocation4], %s199
        %s201 = sand.u32 %s75, 1
        %s202 = smul.addr %s201, 96
        %s203 = scalar_lea.vmem [#allocation7], %s202
        %s204 = smul.u32 2, %s20
        %s205 = smul.u32 2, %s20
        %s206 = sld [smem:[#allocation2]]
        %s207 = sld [smem:[#allocation2 + $0x1]]
        %s208 = sld [smem:[#allocation2 + $0x2]]
        %s209 = sld [smem:[#allocation2 + $0x3]]
        %s210 = sld [smem:[#allocation2 + $0x4]]
        %v211 = vld [vmem:[%s181] sm:$0xff]
        %v212 = vld [vmem:[%s181 + $0x8] sm:$0xff]
        %v213 = vld [vmem:[%s181 + $0x10] sm:$0xff]
        %v214 = vld [vmem:[%s181 + $0x18] sm:$0xff]
        %s215 = scalar_lea.vmem %s181, 32 [#allocation6]
        %v216 = vld [vmem:[%s215] sm:$0xff]
        %v217 = vld [vmem:[%s215 + $0x8] sm:$0xff]
        %v218 = vld [vmem:[%s215 + $0x10] sm:$0xff]
        %v219 = vld [vmem:[%s215 + $0x18] sm:$0xff]
        %s220 = scalar_lea.vmem %s181, 64 [#allocation6]
        %v221 = vld [vmem:[%s220] sm:$0xff]
        %v222 = vld [vmem:[%s220 + $0x8] sm:$0xff]
        %v223 = vld [vmem:[%s220 + $0x10] sm:$0xff]
        %v224 = vld [vmem:[%s220 + $0x18] sm:$0xff]
        %v225 = vstv %s206
        %v226 = vmul.f32 %v211, %v225
        %v227 = vmul.f32 %v212, %v225
        %v228 = vmul.f32 %v213, %v225
        %v229 = vmul.f32 %v214, %v225
        %v230 = vmax.f32 %v226, 0.0
        %v231 = vmax.f32 %v227, 0.0
        %v232 = vmax.f32 %v228, 0.0
        %v233 = vmax.f32 %v229, 0.0
        %v234 = vmin.f32 %v230, 1.0
        %v235 = vmin.f32 %v231, 1.0
        %v236 = vmin.f32 %v232, 1.0
        %v237 = vmin.f32 %v233, 1.0
        %v238 = vstv %s208
        %v239 = vadd.f32 %v234, %v238
        %v240 = vadd.f32 %v235, %v238
        %v241 = vadd.f32 %v236, %v238
        %v242 = vadd.f32 %v237, %v238
        %v243 = vmax.f32 %v239, 0.0
        %v244 = vmax.f32 %v240, 0.0
        %v245 = vmax.f32 %v241, 0.0
        %v246 = vmax.f32 %v242, 0.0
        %v247 = vmin.f32 %v243, 1.0
        %v248 = vmin.f32 %v244, 1.0
        %v249 = vmin.f32 %v245, 1.0
        %v250 = vmin.f32 %v246, 1.0
        %v251 = vmul.f32 %v216, %v225
        %v252 = vmul.f32 %v217, %v225
        %v253 = vmul.f32 %v218, %v225
        %v254 = vmul.f32 %v219, %v225
        %v255 = vmax.f32 %v251, 0.0
        %v256 = vmax.f32 %v252, 0.0
        %v257 = vmax.f32 %v253, 0.0
        %v258 = vmax.f32 %v254, 0.0
        %v259 = vmin.f32 %v255, 1.0
        %v260 = vmin.f32 %v256, 1.0
        %v261 = vmin.f32 %v257, 1.0
        %v262 = vmin.f32 %v258, 1.0
        %v263 = vadd.f32 %v259, %v238
        %v264 = vadd.f32 %v260, %v238
        %v265 = vadd.f32 %v261, %v238
        %v266 = vadd.f32 %v262, %v238
        %v267 = vmax.f32 %v263, 0.0
        %v268 = vmax.f32 %v264, 0.0
        %v269 = vmax.f32 %v265, 0.0
        %v270 = vmax.f32 %v266, 0.0
        %v271 = vmin.f32 %v267, 1.0
        %v272 = vmin.f32 %v268, 1.0
        %v273 = vmin.f32 %v269, 1.0
        %v274 = vmin.f32 %v270, 1.0
        %v275 = vmul.f32 %v221, %v225
        %v276 = vmul.f32 %v222, %v225
        %v277 = vmul.f32 %v223, %v225
        %v278 = vmul.f32 %v224, %v225
        %v279 = vmax.f32 %v275, 0.0
        %v280 = vmax.f32 %v276, 0.0
        %v281 = vmax.f32 %v277, 0.0
        %v282 = vmax.f32 %v278, 0.0
        %v283 = vmin.f32 %v279, 1.0
        %v284 = vmin.f32 %v280, 1.0
        %v285 = vmin.f32 %v281, 1.0
        %v286 = vmin.f32 %v282, 1.0
        %v287 = vadd.f32 %v283, %v238
        %v288 = vadd.f32 %v284, %v238
        %v289 = vadd.f32 %v285, %v238
        %v290 = vadd.f32 %v286, %v238
        %v291 = vmax.f32 %v287, 0.0
        %v292 = vmax.f32 %v288, 0.0
        %v293 = vmax.f32 %v289, 0.0
        %v294 = vmax.f32 %v290, 0.0
        %v295 = vmin.f32 %v291, 1.0
        %v296 = vmin.f32 %v292, 1.0
        %v297 = vmin.f32 %v293, 1.0
        %v298 = vmin.f32 %v294, 1.0
        %v299 = vmax.f32 %v247, %v271
        %v300 = vmax.f32 %v248, %v272
        %v301 = vmax.f32 %v249, %v273
        %v302 = vmax.f32 %v250, %v274
        %v303 = vmax.f32 %v299, %v295
        %v304 = vmax.f32 %v300, %v296
        %v305 = vmax.f32 %v301, %v297
        %v306 = vmax.f32 %v302, %v298
        %v307 = vmin.f32 %v247, %v271
        %v308 = vmin.f32 %v248, %v272
        %v309 = vmin.f32 %v249, %v273
        %v310 = vmin.f32 %v250, %v274
        %v311 = vmin.f32 %v307, %v295
        %v312 = vmin.f32 %v308, %v296
        %v313 = vmin.f32 %v309, %v297
        %v314 = vmin.f32 %v310, %v298
        %vm315 = vcmp.ne.f32.partialorder %v303, 0.0
        %vm316 = vcmp.ne.f32.partialorder %v304, 0.0
        %vm317 = vcmp.ne.f32.partialorder %v305, 0.0
        %vm318 = vcmp.ne.f32.partialorder %v306, 0.0
        %v319 = vsel %vm315, %v303, 1.0
        %v320 = vsel %vm316, %v304, 1.0
        %v321 = vsel %vm317, %v305, 1.0
        %v322 = vsel %vm318, %v306, 1.0
        %v323 = vrcp.pop %v319
        %v324 = vrcp.pop %v320
        %v325 = vrcp.pop %v321
        %v326 = vrcp.pop %v322
        %v327 = vsub.f32 %v303, %v311
        %v328 = vsub.f32 %v304, %v312
        %v329 = vsub.f32 %v305, %v313
        %v330 = vsub.f32 %v306, %v314
        %v331 = vmul.f32 %v327, %v323
        %v332 = vmul.f32 %v328, %v324
        %v333 = vmul.f32 %v329, %v325
        %v334 = vmul.f32 %v330, %v326
        %v335 = vadd.f32 %v327, 1e-08
        %v336 = vadd.f32 %v328, 1e-08
        %v337 = vadd.f32 %v329, 1e-08
        %v338 = vadd.f32 %v330, 1e-08
        %v339 = vrcp.pop %v335
        %v340 = vrcp.pop %v336
        %v341 = vrcp.pop %v337
        %v342 = vrcp.pop %v338
        %v343 = vmul.f32 %v339, 60.0
        %v344 = vmul.f32 %v340, 60.0
        %v345 = vmul.f32 %v341, 60.0
        %v346 = vmul.f32 %v342, 60.0
        %v347 = vsub.f32 %v271, %v295
        %v348 = vsub.f32 %v272, %v296
        %v349 = vsub.f32 %v273, %v297
        %v350 = vsub.f32 %v274, %v298
        %v351 = vmul.f32 %v347, %v343
        %v352 = vmul.f32 %v348, %v344
        %v353 = vmul.f32 %v349, %v345
        %v354 = vmul.f32 %v350, %v346
        %v355 = vsub.f32 %v295, %v247
        %v356 = vsub.f32 %v296, %v248
        %v357 = vsub.f32 %v297, %v249
        %v358 = vsub.f32 %v298, %v250
        %v359 = vmul.f32 %v355, %v343
        %v360 = vmul.f32 %v356, %v344
        %v361 = vmul.f32 %v357, %v345
        %v362 = vmul.f32 %v358, %v346
        %v363 = vadd.f32 %v359, 120.0
        %v364 = vadd.f32 %v360, 120.0
        %v365 = vadd.f32 %v361, 120.0
        %v366 = vadd.f32 %v362, 120.0
        %v367 = vsub.f32 %v247, %v271
        %v368 = vsub.f32 %v248, %v272
        %v369 = vsub.f32 %v249, %v273
        %v370 = vsub.f32 %v250, %v274
        %v371 = vmul.f32 %v367, %v343
        %v372 = vmul.f32 %v368, %v344
        %v373 = vmul.f32 %v369, %v345
        %v374 = vmul.f32 %v370, %v346
        %v375 = vadd.f32 %v371, 240.0
        %v376 = vadd.f32 %v372, 240.0
        %v377 = vadd.f32 %v373, 240.0
        %v378 = vadd.f32 %v374, 240.0
        %vm379 = vcmp.ge.f32.partialorder %v247, %v271
        %vm380 = vcmp.ge.f32.partialorder %v248, %v272
        %vm381 = vcmp.ge.f32.partialorder %v249, %v273
        %vm382 = vcmp.ge.f32.partialorder %v250, %v274
        %vm383 = vcmp.ge.f32.partialorder %v247, %v295
        %vm384 = vcmp.ge.f32.partialorder %v248, %v296
        %vm385 = vcmp.ge.f32.partialorder %v249, %v297
        %vm386 = vcmp.ge.f32.partialorder %v250, %v298
        %vm387 = vmand %vm379, %vm383
        %vm388 = vmand %vm380, %vm384
        %vm389 = vmand %vm381, %vm385
        %vm390 = vmand %vm382, %vm386
        %vm391 = vmxor %vm387, 1
        %vm392 = vmxor %vm388, 1
        %vm393 = vmxor %vm389, 1
        %vm394 = vmxor %vm390, 1
        %vm395 = vcmp.ge.f32.partialorder %v271, %v295
        %vm396 = vcmp.ge.f32.partialorder %v272, %v296
        %vm397 = vcmp.ge.f32.partialorder %v273, %v297
        %vm398 = vcmp.ge.f32.partialorder %v274, %v298
        %vm399 = vmand %vm391, %vm395
        %vm400 = vmand %vm392, %vm396
        %vm401 = vmand %vm393, %vm397
        %vm402 = vmand %vm394, %vm398
        %v403 = vsel %vm399, %v363, %v375
        %v404 = vsel %vm400, %v364, %v376
        %v405 = vsel %vm401, %v365, %v377
        %v406 = vsel %vm402, %v366, %v378
        %v407 = vsel %vm387, %v351, %v403
        %v408 = vsel %vm388, %v352, %v404
        %v409 = vsel %vm389, %v353, %v405
        %v410 = vsel %vm390, %v354, %v406
        %vm411 = vcmp.lt.f32.partialorder %v407, 0.0
        %vm412 = vcmp.lt.f32.partialorder %v408, 0.0
        %vm413 = vcmp.lt.f32.partialorder %v409, 0.0
        %vm414 = vcmp.lt.f32.partialorder %v410, 0.0
        %v415 = vadd.f32 %v407, 360.0
        %v416 = vadd.f32 %v408, 360.0
        %v417 = vadd.f32 %v409, 360.0
        %v418 = vadd.f32 %v410, 360.0
        %v419 = vsel %vm411, %v415, %v407
        %v420 = vsel %vm412, %v416, %v408
        %v421 = vsel %vm413, %v417, %v409
        %v422 = vsel %vm414, %v418, %v410
        %v423 = vstv %s209
        %v424 = vmul.f32 %v331, %v423
        %v425 = vmul.f32 %v332, %v423
        %v426 = vmul.f32 %v333, %v423
        %v427 = vmul.f32 %v334, %v423
        %v428 = vmax.f32 %v424, 0.0
        %v429 = vmax.f32 %v425, 0.0
        %v430 = vmax.f32 %v426, 0.0
        %v431 = vmax.f32 %v427, 0.0
        %v432 = vmin.f32 %v428, 1.0
        %v433 = vmin.f32 %v429, 1.0
        %v434 = vmin.f32 %v430, 1.0
        %v435 = vmin.f32 %v431, 1.0
        %v436 = vstv %s210
        %v437 = vadd.f32 %v419, %v436
        %v438 = vadd.f32 %v420, %v436
        %v439 = vadd.f32 %v421, %v436
        %v440 = vadd.f32 %v422, %v436
        %v441 = vmul.f32 %v437, 0.0027777778
        %v442 = vmul.f32 %v438, 0.0027777778
        %v443 = vmul.f32 %v439, 0.0027777778
        %v444 = vmul.f32 %v440, 0.0027777778
        %v445 = vfloor.f32 %v441
        %v446 = vfloor.f32 %v442
        %v447 = vfloor.f32 %v443
        %v448 = vfloor.f32 %v444
        %v449 = vmul.f32 %v445, 360.0
        %v450 = vmul.f32 %v446, 360.0
        %v451 = vmul.f32 %v447, 360.0
        %v452 = vmul.f32 %v448, 360.0
        %v453 = vsub.f32 %v437, %v449
        %v454 = vsub.f32 %v438, %v450
        %v455 = vsub.f32 %v439, %v451
        %v456 = vsub.f32 %v440, %v452
        %v457 = vmul.f32 %v303, %v432
        %v458 = vmul.f32 %v304, %v433
        %v459 = vmul.f32 %v305, %v434
        %v460 = vmul.f32 %v306, %v435
        %v461 = vmul.f32 %v453, 0.016666668
        %v462 = vmul.f32 %v454, 0.016666668
        %v463 = vmul.f32 %v455, 0.016666668
        %v464 = vmul.f32 %v456, 0.016666668
        %v465 = vadd.f32 %v461, 5.0
        %v466 = vadd.f32 %v462, 5.0
        %v467 = vadd.f32 %v463, 5.0
        %v468 = vadd.f32 %v464, 5.0
        %vm469 = vcmp.ge.f32.partialorder %v465, 6.0
        %vm470 = vcmp.ge.f32.partialorder %v466, 6.0
        %vm471 = vcmp.ge.f32.partialorder %v467, 6.0
        %vm472 = vcmp.ge.f32.partialorder %v468, 6.0
        %v473 = vsub.f32 %v465, 6.0
        %v474 = vsub.f32 %v466, 6.0
        %v475 = vsub.f32 %v467, 6.0
        %v476 = vsub.f32 %v468, 6.0
        %v477 = vsel %vm469, %v473, %v465
        %v478 = vsel %vm470, %v474, %v466
        %v479 = vsel %vm471, %v475, %v467
        %v480 = vsel %vm472, %v476, %v468
        %v481 = vsub.f32 4.0, %v477
        %v482 = vsub.f32 4.0, %v478
        %v483 = vsub.f32 4.0, %v479
        %v484 = vsub.f32 4.0, %v480
        %v485 = vmin.f32 %v477, %v481
        %v486 = vmin.f32 %v478, %v482
        %v487 = vmin.f32 %v479, %v483
        %v488 = vmin.f32 %v480, %v484
        %v489 = vmax.f32 %v485, 0.0
        %v490 = vmax.f32 %v486, 0.0
        %v491 = vmax.f32 %v487, 0.0
        %v492 = vmax.f32 %v488, 0.0
        %v493 = vmin.f32 %v489, 1.0
        %v494 = vmin.f32 %v490, 1.0
        %v495 = vmin.f32 %v491, 1.0
        %v496 = vmin.f32 %v492, 1.0
        %v497 = vmul.f32 %v457, %v493
        %v498 = vmul.f32 %v458, %v494
        %v499 = vmul.f32 %v459, %v495
        %v500 = vmul.f32 %v460, %v496
        %v501 = vsub.f32 %v303, %v497
        %v502 = vsub.f32 %v304, %v498
        %v503 = vsub.f32 %v305, %v499
        %v504 = vsub.f32 %v306, %v500
        %v505 = vadd.f32 %v461, 3.0
        %v506 = vadd.f32 %v462, 3.0
        %v507 = vadd.f32 %v463, 3.0
        %v508 = vadd.f32 %v464, 3.0
        %vm509 = vcmp.ge.f32.partialorder %v505, 6.0
        %vm510 = vcmp.ge.f32.partialorder %v506, 6.0
        %vm511 = vcmp.ge.f32.partialorder %v507, 6.0
        %vm512 = vcmp.ge.f32.partialorder %v508, 6.0
        %v513 = vsub.f32 %v505, 6.0
        %v514 = vsub.f32 %v506, 6.0
        %v515 = vsub.f32 %v507, 6.0
        %v516 = vsub.f32 %v508, 6.0
        %v517 = vsel %vm509, %v513, %v505
        %v518 = vsel %vm510, %v514, %v506
        %v519 = vsel %vm511, %v515, %v507
        %v520 = vsel %vm512, %v516, %v508
        %v521 = vsub.f32 4.0, %v517
        %v522 = vsub.f32 4.0, %v518
        %v523 = vsub.f32 4.0, %v519
        %v524 = vsub.f32 4.0, %v520
        %v525 = vmin.f32 %v517, %v521
        %v526 = vmin.f32 %v518, %v522
        %v527 = vmin.f32 %v519, %v523
        %v528 = vmin.f32 %v520, %v524
        %v529 = vmax.f32 %v525, 0.0
        %v530 = vmax.f32 %v526, 0.0
        %v531 = vmax.f32 %v527, 0.0
        %v532 = vmax.f32 %v528, 0.0
        %v533 = vmin.f32 %v529, 1.0
        %v534 = vmin.f32 %v530, 1.0
        %v535 = vmin.f32 %v531, 1.0
        %v536 = vmin.f32 %v532, 1.0
        %v537 = vmul.f32 %v457, %v533
        %v538 = vmul.f32 %v458, %v534
        %v539 = vmul.f32 %v459, %v535
        %v540 = vmul.f32 %v460, %v536
        %v541 = vsub.f32 %v303, %v537
        %v542 = vsub.f32 %v304, %v538
        %v543 = vsub.f32 %v305, %v539
        %v544 = vsub.f32 %v306, %v540
        %v545 = vadd.f32 %v461, 1.0
        %v546 = vadd.f32 %v462, 1.0
        %v547 = vadd.f32 %v463, 1.0
        %v548 = vadd.f32 %v464, 1.0
        %vm549 = vcmp.ge.f32.partialorder %v545, 6.0
        %vm550 = vcmp.ge.f32.partialorder %v546, 6.0
        %vm551 = vcmp.ge.f32.partialorder %v547, 6.0
        %vm552 = vcmp.ge.f32.partialorder %v548, 6.0
        %v553 = vsub.f32 %v545, 6.0
        %v554 = vsub.f32 %v546, 6.0
        %v555 = vsub.f32 %v547, 6.0
        %v556 = vsub.f32 %v548, 6.0
        %v557 = vsel %vm549, %v553, %v545
        %v558 = vsel %vm550, %v554, %v546
        %v559 = vsel %vm551, %v555, %v547
        %v560 = vsel %vm552, %v556, %v548
        %v561 = vsub.f32 4.0, %v557
        %v562 = vsub.f32 4.0, %v558
        %v563 = vsub.f32 4.0, %v559
        %v564 = vsub.f32 4.0, %v560
        %v565 = vmin.f32 %v557, %v561
        %v566 = vmin.f32 %v558, %v562
        %v567 = vmin.f32 %v559, %v563
        %v568 = vmin.f32 %v560, %v564
        %v569 = vmax.f32 %v565, 0.0
        %v570 = vmax.f32 %v566, 0.0
        %v571 = vmax.f32 %v567, 0.0
        %v572 = vmax.f32 %v568, 0.0
        %v573 = vmin.f32 %v569, 1.0
        %v574 = vmin.f32 %v570, 1.0
        %v575 = vmin.f32 %v571, 1.0
        %v576 = vmin.f32 %v572, 1.0
        %v577 = vmul.f32 %v457, %v573
        %v578 = vmul.f32 %v458, %v574
        %v579 = vmul.f32 %v459, %v575
        %v580 = vmul.f32 %v460, %v576
        %v581 = vsub.f32 %v303, %v577
        %v582 = vsub.f32 %v304, %v578
        %v583 = vsub.f32 %v305, %v579
        %v584 = vsub.f32 %v306, %v580
        %v585 = vstv %s207
        %v586 = vmul.f32 %v501, %v585
        %v587 = vmul.f32 %v502, %v585
        %v588 = vmul.f32 %v503, %v585
        %v589 = vmul.f32 %v504, %v585
        %v590 = vmax.f32 %v586, 0.0
        %v591 = vmax.f32 %v587, 0.0
        %v592 = vmax.f32 %v588, 0.0
        %v593 = vmax.f32 %v589, 0.0
        %v594 = vmin.f32 %v590, 1.0
        %v595 = vmin.f32 %v591, 1.0
        %v596 = vmin.f32 %v592, 1.0
        %v597 = vmin.f32 %v593, 1.0
        %598 = vst [vmem:[%s203] sm:$0xff] %v594
        %599 = vst [vmem:[%s203 + $0x8] sm:$0xff] %v595
        %600 = vst [vmem:[%s203 + $0x10] sm:$0xff] %v596
        %601 = vst [vmem:[%s203 + $0x18] sm:$0xff] %v597
        %v602 = vmul.f32 %v541, %v585
        %v603 = vmul.f32 %v542, %v585
        %v604 = vmul.f32 %v543, %v585
        %v605 = vmul.f32 %v544, %v585
        %v606 = vmax.f32 %v602, 0.0
        %v607 = vmax.f32 %v603, 0.0
        %v608 = vmax.f32 %v604, 0.0
        %v609 = vmax.f32 %v605, 0.0
        %v610 = vmin.f32 %v606, 1.0
        %v611 = vmin.f32 %v607, 1.0
        %v612 = vmin.f32 %v608, 1.0
        %v613 = vmin.f32 %v609, 1.0
        %s614 = scalar_lea.vmem %s203, 32 [#allocation7]
        %615 = vst [vmem:[%s614] sm:$0xff] %v610
        %616 = vst [vmem:[%s614 + $0x8] sm:$0xff] %v611
        %617 = vst [vmem:[%s614 + $0x10] sm:$0xff] %v612
        %618 = vst [vmem:[%s614 + $0x18] sm:$0xff] %v613
        %v619 = vmul.f32 %v581, %v585
        %v620 = vmul.f32 %v582, %v585
        %v621 = vmul.f32 %v583, %v585
        %v622 = vmul.f32 %v584, %v585
        %v623 = vmax.f32 %v619, 0.0
        %v624 = vmax.f32 %v620, 0.0
        %v625 = vmax.f32 %v621, 0.0
        %v626 = vmax.f32 %v622, 0.0
        %v627 = vmin.f32 %v623, 1.0
        %v628 = vmin.f32 %v624, 1.0
        %v629 = vmin.f32 %v625, 1.0
        %v630 = vmin.f32 %v626, 1.0
        %s631 = scalar_lea.vmem %s203, 64 [#allocation7]
        %632 = vst [vmem:[%s631] sm:$0xff] %v627
        %633 = vst [vmem:[%s631 + $0x8] sm:$0xff] %v628
        %634 = vst [vmem:[%s631 + $0x10] sm:$0xff] %v629
        %635 = vst [vmem:[%s631 + $0x18] sm:$0xff] %v630
        %s636 = sand.u32 %s75, 1
        %s637 = scalar_lea.sflag [#allocation4], %s636
        %s638 = sand.u32 %s75, 1
        %s639 = smul.addr %s638, 96
        %s640 = scalar_lea.vmem [#allocation7], %s639
        // Predicated region
        $region37: #{tpu_custom_call.1} parent=27 // pred_check
          %p641 = pneg %p85
        $region38: #{tpu_custom_call.1} parent=27 // pred_check_branch
          %643 = sbr.rel (%p641) target = $region40
        $region39: #{tpu_custom_call.1} parent=27 // pred_region
          #allocation11 [shape = 'u32[6]{0}', space=smem, size = 0x18, scoped, tag = 'DMA stride descriptor']
          %s644 = smul.u32 2, %s20
          %646 = vsyncadd %s637, 0
          %s647 = smul.addr %s644, 2
          %s648 = smul.addr %s647, 8
          %s649 = scalar_lea.hbm %s2, %s648
          %s651 = sshll.u32 1, 14
          %s652 = sxor.u32 4294967295, %s651
          %s655 = sshll.u32 7, 18
          %s656 = sxor.u32 4294967295, %s655
          %s657 = sand.u32 0, %s656
          %s659 = sor.u32 %s657, 0
          %s660 = sshll.u32 %s640, 4
          %s661 = int_to_ptr.vmem [resolvable:$true] %s660
          %s662 = sshll.u32 %s649, 4
          %s663 = int_to_ptr.hbm [resolvable:$true] %s662
          %669 = sst [smem:[#allocation11]] 512
          %s670 = scalar_lea.smem [#allocation11], 1
          %671 = sst [smem:[%s670]] 2048
          %s672 = scalar_lea.smem [#allocation11], 2
          %673 = sst [smem:[%s672]] 2
          %s674 = scalar_lea.smem [#allocation11], 3
          %675 = sst [smem:[%s674]] 256
          %s676 = scalar_lea.smem [#allocation11], 4
          %677 = sst [smem:[%s676]] 256
          %s678 = scalar_lea.smem [#allocation11], 5
          %679 = sst [smem:[%s678]] 16
          %681 = dma.general %s661, 1536, %s663, %s637, [#allocation10], [#allocation11], %s659, 0
        $region40: #{tpu_custom_call.1} parent=27 // pred_fallthru
          _
      $region28: #{tpu_custom_call.1} parent=5 // pred_fallthru
        _
      %p682 = scmp.le.s32.totalorder 2, %s15
      // Predicated region
      $region41: #{tpu_custom_call.1} parent=5 // pred_check
        %p683 = pneg %p682
      $region42: #{tpu_custom_call.1} parent=5 // pred_check_branch
        %685 = sbr.rel (%p683) target = $region44
      $region43: #{tpu_custom_call.1} parent=5 // pred_region
        %s686 = ssub.s32 %s15, 2
        // Predicated region
        $region45: #{tpu_custom_call.1} parent=43 // pred_check
          %p687 = pneg %p91
        $region46: #{tpu_custom_call.1} parent=43 // pred_check_branch
          %689 = sbr.rel (%p687) target = $region48
        $region47: #{tpu_custom_call.1} parent=43 // pred_region
          %s690 = sand.u32 %s76, 1
          %s691 = scalar_lea.sflag [#allocation4], %s690
          %s692 = sand.u32 %s76, 1
          %s693 = smul.addr %s692, 96
          %s694 = scalar_lea.vmem [#allocation7], %s693
          %696 = dma.done %s691, 1536
        $region48: #{tpu_custom_call.1} parent=43 // pred_fallthru
          _
      $region44: #{tpu_custom_call.1} parent=5 // pred_fallthru
        _
    $region6: #{tpu_custom_call.1} parent=1 // loop_footer
      %s19 = sadd.s32 1, %s15
    $region7: #{tpu_custom_call.1} parent=1 // loop_footer_branch
      %14 = sbr.rel target = $region3
    $region8: #{tpu_custom_call.1} parent=1 // loop_exit
      _
    %697 = vsyncpa [#allocation3], 1
    %s698 = scalar_lea.sflag [#allocation3], 1
    %699 = vsyncpa %s698, 1
    %700 = vsyncpa [#allocation4], 1
    %s701 = scalar_lea.sflag [#allocation4], 1
    %702 = vsyncpa %s701, 1
    %703 = vsyncpa [#allocation5], 1
    %s704 = scalar_lea.sflag [#allocation5], 1
    %705 = vsyncpa %s704, 1

</llo_original>
